<compile_context>
chip_gen: v5e
topology: v5e:2x2
jax: 0.10.0
libtpu: 0.0.40
codegen_flags: <defaults>
</compile_context>

<pallas_src>
import jax
import jax.numpy as jnp
from jax.experimental import pallas as pl
from jax.experimental.pallas import tpu as pltpu

EMBEDDING_DIM = 50
MARGIN = 1.0

# slot order in the stacked embedding tensor
_H, _R, _T, _HN, _RN, _TN = range(6)


def _round_up(x, m):
    return ((x + m - 1) // m) * m


def _transe_score_kernel(emb_ref, pos_ref, neg_ref):
    """emb_ref: (6, D, TB) tile (f32 or bf16); pos_ref/neg_ref: (1, TB) f32."""

    def slot(i):
        # Load one (D, TB) slab and upcast to f32 (accumulation always f32;
        # v5e has no bf16 VALU anyway).
        return emb_ref[i].astype(jnp.float32)

    # score_func: score1 = sum(|h + r - t|) over the embedding dimension.
    # D sits on the sublane axis, so this is a cross-sublane reduce producing
    # lane-dense (1, TB) results (unmasked vector stores).  The kernel is
    # HBM-bound (~1 FLOP/byte), so the XLU reduce and VPU add/abs are free
    # filler under the DMA -- no MXU trick needed or wanted.
    pos_diff = slot(_H) + slot(_R) - slot(_T)        # (D, TB)
    neg_diff = slot(_HN) + slot(_RN) - slot(_TN)     # (D, TB)
    pos_ref[...] = jnp.sum(jnp.abs(pos_diff), axis=0, keepdims=True)  # (1, TB)
    neg_ref[...] = jnp.sum(jnp.abs(neg_diff), axis=0, keepdims=True)  # (1, TB)


def transe_forward(entity_vec, relation_vec, p_idx, n_idx, *,
                   block_b=4096, stream_dtype=jnp.bfloat16):
    """Pallas-backed TransE forward.

    entity_vec:   (n_entity, D)   float32 embedding table
    relation_vec: (n_relation, D) float32 embedding table
    p_idx, n_idx: (B, 3) int32 triples; columns are (head, tail, relation)
    stream_dtype: dtype of the stacked embedding stream fed to the kernel
                  (bf16 halves HBM bytes; in-kernel math stays f32).

    Returns (loss_scalar, pos_score (B,), neg_score (B,)).
    """
    B = p_idx.shape[0]
    D = entity_vec.shape[1]

    # ---- tile-size selection ------------------------------------------------
    # Pad the batch to a lane-aligned, tile-aligned size.  Use the biggest tile
    # that fits (default 4096 lanes) to amortize per-grid-step overhead, but if
    # the whole padded batch would fit in a single block while spanning >=2
    # 128-lane tiles, halve the tile so there are >=2 grid blocks and the
    # "parallel" axis can be sharded across both TensorCores on v7x.
    b_pad = _round_up(B, 128)
    tb = min(block_b, b_pad)
    if b_pad > 128 and b_pad <= tb:
        tb = _round_up(b_pad // 2, 128)
    b_pad = _round_up(b_pad, tb)
    n_blocks = b_pad // tb

    def pad_idx(col):
        # Padded rows gather row 0; their scores are sliced off below.
        return jnp.pad(col.astype(jnp.int32), (0, b_pad - B))

    h, t, r = pad_idx(p_idx[:, 0]), pad_idx(p_idx[:, 1]), pad_idx(p_idx[:, 2])
    hn, tn, rn = pad_idx(n_idx[:, 0]), pad_idx(n_idx[:, 1]), pad_idx(n_idx[:, 2])

    # ---- wrapper-side gather (contiguous rows, batched takes) ---------------
    # Gather contiguous rows from the *untransposed* tables (one contiguous
    # 100/200-byte read per triple instead of D strided 4-byte column reads),
    # batching the four entity index vectors into one take and the two relation
    # index vectors into another, then form the lane-dense (6, D, b_pad) layout
    # in the stream dtype.
    # TODO(synk): eliminate the materialized (6, D, b_pad) HBM intermediate
    # entirely -- either via CompilerParams(allow_input_fusion=[True]) once
    # validated, or by keeping the (tiny) tables VMEM-resident and gathering
    # inside the kernel when Mosaic's sublane dynamic-gather is guaranteed.
    ent_tab = entity_vec.astype(stream_dtype)     # (n_entity, D)
    rel_tab = relation_vec.astype(stream_dtype)   # (n_relation, D)
    ent_g = jnp.take(ent_tab, jnp.concatenate([h, t, hn, tn]), axis=0)
    rel_g = jnp.take(rel_tab, jnp.concatenate([r, rn]), axis=0)
    ent_g = ent_g.reshape(4, b_pad, D).transpose(0, 2, 1)   # (4, D, b_pad)
    rel_g = rel_g.reshape(2, b_pad, D).transpose(0, 2, 1)   # (2, D, b_pad)
    emb = jnp.stack(
        [ent_g[0], rel_g[0], ent_g[1], ent_g[2], rel_g[1], ent_g[3]],
        axis=0,
    )  # (6, D, b_pad), slots [h, r, t, hn, rn, tn]

    emb_spec = pl.BlockSpec((6, D, tb), lambda i: (0, 0, i))
    score_spec = pl.BlockSpec((1, tb), lambda i: (0, i))

    pos, neg = pl.pallas_call(
        _transe_score_kernel,
        out_shape=(
            jax.ShapeDtypeStruct((1, b_pad), jnp.float32),
            jax.ShapeDtypeStruct((1, b_pad), jnp.float32),
        ),
        grid_spec=pltpu.PrefetchScalarGridSpec(
            num_scalar_prefetch=0,
            grid=(n_blocks,),
            in_specs=[emb_spec],
            out_specs=(score_spec, score_spec),
        ),
        compiler_params=pltpu.CompilerParams(
            dimension_semantics=("parallel",),
            # Headroom for f32 streams at tb=4096 on v5e's 16 MiB default;
            # 32 MiB is within physical VMEM on every generation.
            vmem_limit_bytes=32 * 1024 * 1024,
        ),
    )(emb)

    pos = pos[0, :B]
    neg = neg[0, :B]

    # MarginRankingLoss(margin)(pos, neg, y=-1)
    #   = mean(max(0, -y*(pos - neg) + margin)) = mean(max(0, pos - neg + margin))
    loss = jnp.mean(jnp.maximum(pos - neg + MARGIN, 0.0))
    return loss, pos, neg


def _reference(entity_vec, relation_vec, p_idx, n_idx):
    """Pure-JAX (f32) reference for correctness check."""
    def score(e, rel, idx):
        hv = e[idx[:, 0]]
        tv = e[idx[:, 1]]
        rv = rel[idx[:, 2]]
        return jnp.sum(jnp.abs(hv + rv - tv), axis=1)

    pos = score(entity_vec, relation_vec, p_idx)
    neg = score(entity_vec, relation_vec, n_idx)
    loss = jnp.mean(jnp.maximum(pos - neg + MARGIN, 0.0))
    return loss, pos, neg


def _make_triples(key, batch, n_entity, n_relation):
    kh, kt, kr = jax.random.split(key, 3)
    heads = jax.random.randint(kh, (batch,), 0, n_entity)
    tails = jax.random.randint(kt, (batch,), 0, n_entity)
    rels = jax.random.randint(kr, (batch,), 0, n_relation)
    return jnp.stack([heads, tails, rels], axis=1).astype(jnp.int32)


if __name__ == "__main__":
    key = jax.random.PRNGKey(0)
    k_ent, k_rel, k_p, k_n, k_p2, k_n2 = jax.random.split(key, 6)

    # Small synthetic knowledge graph (the module's read_data would set these
    # from FB15K files).
    n_entity = 16
    n_relation = 4

    bound = 1.0 / float(EMBEDDING_DIM) ** 0.5
    entity_vec = jax.random.uniform(
        k_ent, (n_entity, EMBEDDING_DIM), jnp.float32, -bound, bound)
    relation_vec = jax.random.uniform(
        k_rel, (n_relation, EMBEDDING_DIM), jnp.float32, -bound, bound)

    # --- small batch, f32 stream: exact check, single tile -------------------
    batch = 8
    p_idx = _make_triples(k_p, batch, n_entity, n_relation)
    n_idx = _make_triples(k_n, batch, n_entity, n_relation)

    loss, pos, neg = transe_forward(
        entity_vec, relation_vec, p_idx, n_idx, stream_dtype=jnp.float32)
    jax.block_until_ready((loss, pos, neg))

    ref_loss, ref_pos, ref_neg = _reference(entity_vec, relation_vec, p_idx, n_idx)
    assert jnp.allclose(pos, ref_pos, atol=1e-5), (pos, ref_pos)
    assert jnp.allclose(neg, ref_neg, atol=1e-5), (neg, ref_neg)
    assert jnp.allclose(loss, ref_loss, atol=1e-5), (loss, ref_loss)

    # --- multi-tile batch, default bf16 stream: grid >= 2, padding path ------
    batch2 = 200
    p_idx2 = _make_triples(k_p2, batch2, n_entity, n_relation)
    n_idx2 = _make_triples(k_n2, batch2, n_entity, n_relation)

    loss2, pos2, neg2 = transe_forward(entity_vec, relation_vec, p_idx2, n_idx2)
    jax.block_until_ready((loss2, pos2, neg2))

    ref_loss2, ref_pos2, ref_neg2 = _reference(
        entity_vec, relation_vec, p_idx2, n_idx2)
    # bf16 input stream -> loosened tolerances (scores are O(5-10)).
    assert jnp.allclose(pos2, ref_pos2, rtol=2e-2, atol=1e-1), (pos2, ref_pos2)
    assert jnp.allclose(neg2, ref_neg2, rtol=2e-2, atol=1e-1), (neg2, ref_neg2)
    assert jnp.allclose(loss2, ref_loss2, atol=5e-2), (loss2, ref_loss2)

    # --- same multi-tile batch, f32 stream, small explicit tile: exact check -
    loss3, pos3, neg3 = transe_forward(
        entity_vec, relation_vec, p_idx2, n_idx2,
        block_b=128, stream_dtype=jnp.float32)
    jax.block_until_ready((loss3, pos3, neg3))
    assert jnp.allclose(pos3, ref_pos2, atol=1e-4), (pos3, ref_pos2)
    assert jnp.allclose(neg3, ref_neg2, atol=1e-4), (neg3, ref_neg2)
    assert jnp.allclose(loss3, ref_loss2, atol=1e-5), (loss3, ref_loss2)

    print("KERNEL_OK")
</pallas_src>

<mosaic_0001>
module attributes {stable_mosaic.version = 11 : i64} {
  func.func @_transe_score_kernel(%arg0: i32, %arg1: memref<6x50x128xf32, #tpu.memory_space<vmem>>, %arg2: memref<1x128xf32, #tpu.memory_space<vmem>>, %arg3: memref<1x128xf32, #tpu.memory_space<vmem>>) attributes {dimension_semantics = [#tpu.dimension_semantics<parallel>], iteration_bounds = array<i64: 1>, scalar_prefetch = 0 : i64, scratch_operands = 0 : i64, tpu.core_type = #tpu.core_type<tc>, window_params = [{transform_indices = @transform_0, window_bounds = array<i64: 6, 50, 128>}, {transform_indices = @transform_1, window_bounds = array<i64: 1, 128>}, {transform_indices = @transform_2, window_bounds = array<i64: 1, 128>}]} {
    %c0 = arith.constant 0 : index
    %c0_0 = arith.constant 0 : index
    %c0_1 = arith.constant 0 : index
    %0 = vector.load %arg1[%c0, %c0_0, %c0_1] : memref<6x50x128xf32, #tpu.memory_space<vmem>>, vector<1x50x128xf32>
    %1 = vector.shape_cast %0 : vector<1x50x128xf32> to vector<50x128xf32>
    %c1 = arith.constant 1 : index
    %c0_2 = arith.constant 0 : index
    %c0_3 = arith.constant 0 : index
    %2 = vector.load %arg1[%c1, %c0_2, %c0_3] : memref<6x50x128xf32, #tpu.memory_space<vmem>>, vector<1x50x128xf32>
    %3 = vector.shape_cast %2 : vector<1x50x128xf32> to vector<50x128xf32>
    %4 = arith.addf %1, %3 : vector<50x128xf32>
    %c2 = arith.constant 2 : index
    %c0_4 = arith.constant 0 : index
    %c0_5 = arith.constant 0 : index
    %5 = vector.load %arg1[%c2, %c0_4, %c0_5] : memref<6x50x128xf32, #tpu.memory_space<vmem>>, vector<1x50x128xf32>
    %6 = vector.shape_cast %5 : vector<1x50x128xf32> to vector<50x128xf32>
    %7 = arith.subf %4, %6 : vector<50x128xf32>
    %c3 = arith.constant 3 : index
    %c0_6 = arith.constant 0 : index
    %c0_7 = arith.constant 0 : index
    %8 = vector.load %arg1[%c3, %c0_6, %c0_7] : memref<6x50x128xf32, #tpu.memory_space<vmem>>, vector<1x50x128xf32>
    %9 = vector.shape_cast %8 : vector<1x50x128xf32> to vector<50x128xf32>
    %c4 = arith.constant 4 : index
    %c0_8 = arith.constant 0 : index
    %c0_9 = arith.constant 0 : index
    %10 = vector.load %arg1[%c4, %c0_8, %c0_9] : memref<6x50x128xf32, #tpu.memory_space<vmem>>, vector<1x50x128xf32>
    %11 = vector.shape_cast %10 : vector<1x50x128xf32> to vector<50x128xf32>
    %12 = arith.addf %9, %11 : vector<50x128xf32>
    %c5 = arith.constant 5 : index
    %c0_10 = arith.constant 0 : index
    %c0_11 = arith.constant 0 : index
    %13 = vector.load %arg1[%c5, %c0_10, %c0_11] : memref<6x50x128xf32, #tpu.memory_space<vmem>>, vector<1x50x128xf32>
    %14 = vector.shape_cast %13 : vector<1x50x128xf32> to vector<50x128xf32>
    %15 = arith.subf %12, %14 : vector<50x128xf32>
    %16 = math.absf %7 : vector<50x128xf32>
    %cst = arith.constant dense<0.000000e+00> : vector<128xf32>
    %17 = vector.multi_reduction <add>, %16, %cst [0] : vector<50x128xf32> to vector<128xf32>
    %18 = vector.shape_cast %17 : vector<128xf32> to vector<1x128xf32>
    %c0_12 = arith.constant 0 : index
    %c0_13 = arith.constant 0 : index
    %19 = vector.load %arg2[%c0_12, %c0_13] : memref<1x128xf32, #tpu.memory_space<vmem>>, vector<1x128xf32>
    tpu.vector_store %arg2[%c0_12, %c0_13], %18 {strides = array<i32>} : memref<1x128xf32, #tpu.memory_space<vmem>>, vector<1x128xf32>,
    %20 = math.absf %15 : vector<50x128xf32>
    %cst_14 = arith.constant dense<0.000000e+00> : vector<128xf32>
    %21 = vector.multi_reduction <add>, %20, %cst_14 [0] : vector<50x128xf32> to vector<128xf32>
    %22 = vector.shape_cast %21 : vector<128xf32> to vector<1x128xf32>
    %c0_15 = arith.constant 0 : index
    %c0_16 = arith.constant 0 : index
    %23 = vector.load %arg3[%c0_15, %c0_16] : memref<1x128xf32, #tpu.memory_space<vmem>>, vector<1x128xf32>
    tpu.vector_store %arg3[%c0_15, %c0_16], %22 {strides = array<i32>} : memref<1x128xf32, #tpu.memory_space<vmem>>, vector<1x128xf32>,
    return
  }
  func.func @transform_0(%arg0: i32) -> (i32, i32, i32) {
    %c0_i32 = arith.constant 0 : i32
    %c0_i32_0 = arith.constant 0 : i32
    %c0_i32_1 = arith.constant 0 : i32
    return %c0_i32, %c0_i32_0, %arg0 : i32, i32, i32
  }
  func.func @transform_1(%arg0: i32) -> (i32, i32) {
    %c0_i32 = arith.constant 0 : i32
    %c0_i32_0 = arith.constant 0 : i32
    return %c0_i32, %arg0 : i32, i32
  }
  func.func @transform_2(%arg0: i32) -> (i32, i32) {
    %c0_i32 = arith.constant 0 : i32
    %c0_i32_0 = arith.constant 0 : i32
    return %c0_i32, %arg0 : i32, i32
  }
}

</mosaic_0001>

<llo_original>
// kernel: tpu_custom_call.1
$region0: #{tpu_custom_call.1}
  #allocation0 [shape = 'u32[]', space=smem, size = 0x4, offset = 0x4, fixed_abs, tag = 'smem constant byte address 0x4 - core index']
  #allocation1 [shape = 'u32[72,128]{1,0:T(1,128)}', space=vmem, size = 0x9000, scoped, tag = 'internal scratch']
  %s0 = inlined_call_operand.hbm [shape: f32[6,50,128], index: 0, kind: input, shape index: {}]
  %s1 = inlined_call_operand.hbm [shape: f32[1,128], index: 1, kind: output, shape index: {0}]
  %s2 = inlined_call_operand.hbm [shape: f32[1,128], index: 2, kind: output, shape index: {1}]
  %3 = xla_tuple %s1, %s2
  %s4 = sld [smem:[#allocation0]]
  $region26: #{tpu_custom_call.1} parent=0
    _
  %s6 = ssub.s32 1, %s4
  %s7 = scalar_select 0, %s6, %s4
  $region1: #{tpu_custom_call.1} parent=0
    #allocation2 [shape = 'u8[172032]{0}', space=vmem, size = 0x2a000, scoped, tag = 'input window, operand 0, single buffered']
    #allocation3 [shape = 's32[1]{0}', space=sflag, size = 0x4, scoped, tag = 'scoped memory for tpu_custom_call.1']
    #allocation4 [shape = 's32[1]{0}', space=sflag, size = 0x4, scoped, tag = 'scoped memory for tpu_custom_call.1']
    #allocation5 [shape = 'u8[512]{0}', space=vmem, size = 0x400, scoped, tag = 'output window, operand 0, single buffered']
    #allocation6 [shape = 'u8[512]{0}', space=vmem, size = 0x400, scoped, tag = 'output window, operand 1, single buffered']
    #allocation7 [shape = 's32[1]{0}', space=sflag, size = 0x4, scoped, tag = 'scoped memory for tpu_custom_call.1']
    %8 = vsyncpa [#allocation3], 0
    %9 = vsyncpa [#allocation4], 0
    %10 = vsyncpa [#allocation7], 0
    // Predicated region
    $region2: #{tpu_custom_call.1} parent=1 // pred_check
      _
    $region3: #{tpu_custom_call.1} parent=1 // pred_check_branch
      %12 = sbr.rel (0) target = $region5
    $region4: #{tpu_custom_call.1} parent=1 // pred_region
      %14 = vsyncadd [#allocation3], 0
      %s15 = sshll.u32 %s0, 4
      %s16 = int_to_ptr.hbm [resolvable:$true] %s15
      %s17 = sshll.u32 [#allocation2], 4
      %s18 = int_to_ptr.vmem [resolvable:$true] %s17
      %23 = dma.hbm_to_vmem [thread:$0]  %s16, 5376, %s18, [#allocation3], 128, 128, 8
    $region5: #{tpu_custom_call.1} parent=1 // pred_fallthru
      _
    // Predicated region
    $region6: #{tpu_custom_call.1} parent=1 // pred_check
      _
    $region7: #{tpu_custom_call.1} parent=1 // pred_check_branch
      %25 = sbr.rel (0) target = $region9
    $region8: #{tpu_custom_call.1} parent=1 // pred_region
      %27 = dma.done [#allocation3], 5376
    $region9: #{tpu_custom_call.1} parent=1 // pred_fallthru
      _
    %v28 = vld [vmem:[#allocation2] sm:$0xff]
    %v29 = vld [vmem:[#allocation2 + $0x8] sm:$0xff]
    %v30 = vld [vmem:[#allocation2 + $0x10] sm:$0xff]
    %v31 = vld [vmem:[#allocation2 + $0x18] sm:$0xff]
    %v32 = vld [vmem:[#allocation2 + $0x20] sm:$0xff]
    %v33 = vld [vmem:[#allocation2 + $0x28] sm:$0xff]
    %v34 = vld [vmem:[#allocation2 + $0x30] sm:$0x3]
    %s35 = scalar_lea.vmem [#allocation2], 56
    %v36 = vld [vmem:[%s35] sm:$0xff]
    %v37 = vld [vmem:[%s35 + $0x8] sm:$0xff]
    %v38 = vld [vmem:[%s35 + $0x10] sm:$0xff]
    %v39 = vld [vmem:[%s35 + $0x18] sm:$0xff]
    %v40 = vld [vmem:[%s35 + $0x20] sm:$0xff]
    %v41 = vld [vmem:[%s35 + $0x28] sm:$0xff]
    %v42 = vld [vmem:[%s35 + $0x30] sm:$0x3]
    %v43 = vadd.f32 %v28, %v36
    %v44 = vadd.f32 %v29, %v37
    %v45 = vadd.f32 %v30, %v38
    %v46 = vadd.f32 %v31, %v39
    %v47 = vadd.f32 %v32, %v40
    %v48 = vadd.f32 %v33, %v41
    %v49 = vadd.f32 %v34, %v42
    %s50 = scalar_lea.vmem [#allocation2], 112
    %v51 = vld [vmem:[%s50] sm:$0xff]
    %v52 = vld [vmem:[%s50 + $0x8] sm:$0xff]
    %v53 = vld [vmem:[%s50 + $0x10] sm:$0xff]
    %v54 = vld [vmem:[%s50 + $0x18] sm:$0xff]
    %v55 = vld [vmem:[%s50 + $0x20] sm:$0xff]
    %v56 = vld [vmem:[%s50 + $0x28] sm:$0xff]
    %v57 = vld [vmem:[%s50 + $0x30] sm:$0x3]
    %v58 = vsub.f32 %v43, %v51
    %v59 = vsub.f32 %v44, %v52
    %v60 = vsub.f32 %v45, %v53
    %v61 = vsub.f32 %v46, %v54
    %v62 = vsub.f32 %v47, %v55
    %v63 = vsub.f32 %v48, %v56
    %v64 = vsub.f32 %v49, %v57
    %s65 = scalar_lea.vmem [#allocation2], 168
    %v66 = vld [vmem:[%s65] sm:$0xff]
    %v67 = vld [vmem:[%s65 + $0x8] sm:$0xff]
    %v68 = vld [vmem:[%s65 + $0x10] sm:$0xff]
    %v69 = vld [vmem:[%s65 + $0x18] sm:$0xff]
    %v70 = vld [vmem:[%s65 + $0x20] sm:$0xff]
    %v71 = vld [vmem:[%s65 + $0x28] sm:$0xff]
    %v72 = vld [vmem:[%s65 + $0x30] sm:$0x3]
    %s73 = scalar_lea.vmem [#allocation2], 224
    %v74 = vld [vmem:[%s73] sm:$0xff]
    %v75 = vld [vmem:[%s73 + $0x8] sm:$0xff]
    %v76 = vld [vmem:[%s73 + $0x10] sm:$0xff]
    %v77 = vld [vmem:[%s73 + $0x18] sm:$0xff]
    %v78 = vld [vmem:[%s73 + $0x20] sm:$0xff]
    %v79 = vld [vmem:[%s73 + $0x28] sm:$0xff]
    %v80 = vld [vmem:[%s73 + $0x30] sm:$0x3]
    %v81 = vadd.f32 %v66, %v74
    %v82 = vadd.f32 %v67, %v75
    %v83 = vadd.f32 %v68, %v76
    %v84 = vadd.f32 %v69, %v77
    %v85 = vadd.f32 %v70, %v78
    %v86 = vadd.f32 %v71, %v79
    %v87 = vadd.f32 %v72, %v80
    %s88 = scalar_lea.vmem [#allocation2], 280
    %v89 = vld [vmem:[%s88] sm:$0xff]
    %v90 = vld [vmem:[%s88 + $0x8] sm:$0xff]
    %v91 = vld [vmem:[%s88 + $0x10] sm:$0xff]
    %v92 = vld [vmem:[%s88 + $0x18] sm:$0xff]
    %v93 = vld [vmem:[%s88 + $0x20] sm:$0xff]
    %v94 = vld [vmem:[%s88 + $0x28] sm:$0xff]
    %v95 = vld [vmem:[%s88 + $0x30] sm:$0x3]
    %v96 = vsub.f32 %v81, %v89
    %v97 = vsub.f32 %v82, %v90
    %v98 = vsub.f32 %v83, %v91
    %v99 = vsub.f32 %v84, %v92
    %v100 = vsub.f32 %v85, %v93
    %v101 = vsub.f32 %v86, %v94
    %v102 = vsub.f32 %v87, %v95
    %v103 = vand.u32 2147483647, %v58
    %v104 = vand.u32 2147483647, %v59
    %v105 = vand.u32 2147483647, %v60
    %v106 = vand.u32 2147483647, %v61
    %v107 = vand.u32 2147483647, %v62
    %v108 = vand.u32 2147483647, %v63
    %v109 = vand.u32 2147483647, %v64
    %v110 = vadd.f32 %v103, %v104
    %v111 = vadd.f32 %v110, %v105
    %v112 = vadd.f32 %v111, %v106
    %v113 = vadd.f32 %v112, %v107
    %v114 = vadd.f32 %v113, %v108
    %vm115 = vcmask 1041408
    %v116 = vsel %vm115, %v109, 0.0
    %v117 = vadd.f32 %v114, %v116
    %v118 = vrot.slane %v117, 4
    %v119 = vadd.f32 %v117, %v118
    %v120 = vrot.slane %v119, 2
    %v121 = vadd.f32 %v119, %v120
    %v122 = vrot.slane %v121, 1
    %v123 = vadd.f32 %v121, %v122
    %124 = vst [vmem:[#allocation5] sm:$0x1] %v123
    %v125 = vand.u32 2147483647, %v96
    %v126 = vand.u32 2147483647, %v97
    %v127 = vand.u32 2147483647, %v98
    %v128 = vand.u32 2147483647, %v99
    %v129 = vand.u32 2147483647, %v100
    %v130 = vand.u32 2147483647, %v101
    %v131 = vand.u32 2147483647, %v102
    %v132 = vadd.f32 %v125, %v126
    %v133 = vadd.f32 %v132, %v127
    %v134 = vadd.f32 %v133, %v128
    %v135 = vadd.f32 %v134, %v129
    %v136 = vadd.f32 %v135, %v130
    %v137 = vsel %vm115, %v131, 0.0
    %v138 = vadd.f32 %v136, %v137
    %v139 = vrot.slane %v138, 4
    %v140 = vadd.f32 %v138, %v139
    %v141 = vrot.slane %v140, 2
    %v142 = vadd.f32 %v140, %v141
    %v143 = vrot.slane %v142, 1
    %v144 = vadd.f32 %v142, %v143
    %145 = vst [vmem:[#allocation6] sm:$0x1] %v144
    // Predicated region
    $region10: #{tpu_custom_call.1} parent=1 // pred_check
      _
    $region11: #{tpu_custom_call.1} parent=1 // pred_check_branch
      %147 = sbr.rel (0) target = $region13
    $region12: #{tpu_custom_call.1} parent=1 // pred_region
      %149 = vsyncadd [#allocation4], 0
      %s151 = sshll.u32 [#allocation5], 4
      %s152 = int_to_ptr.vmem [resolvable:$true] %s151
      %s153 = sshll.u32 %s1, 4
      %s154 = int_to_ptr.hbm [resolvable:$true] %s153
      %156 = dma.vmem_to_hbm [thread:$0]  %s152, 16, %s154, [#allocation4]
    $region13: #{tpu_custom_call.1} parent=1 // pred_fallthru
      _
    // Predicated region
    $region14: #{tpu_custom_call.1} parent=1 // pred_check
      _
    $region15: #{tpu_custom_call.1} parent=1 // pred_check_branch
      %158 = sbr.rel (0) target = $region17
    $region16: #{tpu_custom_call.1} parent=1 // pred_region
      %160 = vsyncadd [#allocation7], 0
      %s162 = sshll.u32 [#allocation6], 4
      %s163 = int_to_ptr.vmem [resolvable:$true] %s162
      %s164 = sshll.u32 %s2, 4
      %s165 = int_to_ptr.hbm [resolvable:$true] %s164
      %167 = dma.vmem_to_hbm [thread:$0]  %s163, 16, %s165, [#allocation7]
    $region17: #{tpu_custom_call.1} parent=1 // pred_fallthru
      _
    // Predicated region
    $region18: #{tpu_custom_call.1} parent=1 // pred_check
      _
    $region19: #{tpu_custom_call.1} parent=1 // pred_check_branch
      %169 = sbr.rel (0) target = $region21
    $region20: #{tpu_custom_call.1} parent=1 // pred_region
      %171 = dma.done [#allocation4], 16
    $region21: #{tpu_custom_call.1} parent=1 // pred_fallthru
      _
    // Predicated region
    $region22: #{tpu_custom_call.1} parent=1 // pred_check
      _
    $region23: #{tpu_custom_call.1} parent=1 // pred_check_branch
      %173 = sbr.rel (0) target = $region25
    $region24: #{tpu_custom_call.1} parent=1 // pred_region
      %175 = dma.done [#allocation7], 16
    $region25: #{tpu_custom_call.1} parent=1 // pred_fallthru
      _
    %176 = vsyncpa [#allocation3], 1
    %177 = vsyncpa [#allocation4], 1
    %178 = vsyncpa [#allocation7], 1

</llo_original>
